<compile_context>
chip_gen: v6e
topology: v6e:2x2x1
jax: 0.10.0
libtpu: 0.0.40
codegen_flags: <defaults>
</compile_context>

<pallas_src>
import math
import jax
import jax.numpy as jnp
from jax.experimental import pallas as pl
from jax.experimental.pallas import tpu as pltpu

IN_FEATURES = 8
NEURONS = 11
OUT_FEATURES = 2
HIDDEN_LAYER_NUM = 5
NUM_LAYERS = HIDDEN_LAYER_NUM + 2          # first + 5 hidden + last
L1_WEIGHT = 1e-05

LANE = 128   # lane (last-dim) padding
SUB = 8      # sublane (second-to-last dim) alignment
MAX_TM = 256  # batch tile for the gridded path


def _pad_to(x, rows, cols):
    return jnp.pad(x, ((0, rows - x.shape[0]), (0, cols - x.shape[1])))


# ----------------------------------------------------------------------------
# Kernel
# ----------------------------------------------------------------------------
def dmcc_kernel(x_ref, w_ref, b_ref, out_ref):
    # x_ref:  (TM, 128) bf16   (features zero-padded 8 -> 128)
    # w_ref:  (7, 128, 128) bf16, resident in VMEM across grid steps
    # b_ref:  (7, 1, 128)  f32
    # out_ref:(TM, 128) f32    (real outputs in lanes [:2])

    # first layer + ReLU
    h = jnp.dot(x_ref[...], w_ref[0], preferred_element_type=jnp.float32)
    h = jnp.maximum(h + b_ref[0], 0.0)

    # 5 hidden layers (Linear + ReLU), statically unrolled
    for i in range(1, 1 + HIDDEN_LAYER_NUM):
        h = jnp.dot(h.astype(jnp.bfloat16), w_ref[i],
                    preferred_element_type=jnp.float32)
        h = jnp.maximum(h + b_ref[i], 0.0)

    # last layer (no activation)
    out = jnp.dot(h.astype(jnp.bfloat16), w_ref[NUM_LAYERS - 1],
                  preferred_element_type=jnp.float32)
    out_ref[...] = out + b_ref[NUM_LAYERS - 1]


# ----------------------------------------------------------------------------
# One-time parameter preparation (padding, stacking, L1) -- NOT per forward.
# ----------------------------------------------------------------------------
def prepare_params(params):
    ws = [params["w1"]] + list(params["wh"]) + [params["wl"]]
    bs = [params["b1"]] + list(params["bh"]) + [params["bl"]]

    w_stack = jnp.stack(
        [_pad_to(w.astype(jnp.float32), LANE, LANE) for w in ws]
    ).astype(jnp.bfloat16)                                     # (7, 128, 128)
    b_stack = jnp.stack(
        [_pad_to(b.astype(jnp.float32)[None, :], 1, LANE) for b in bs]
    )                                                           # (7, 1, 128)

    # x-independent L1 penalty over the raw (unpadded) f32 weights.
    l1 = sum(jnp.sum(jnp.abs(w)) for w in ws) * jnp.float32(L1_WEIGHT)

    return {"w": w_stack, "b": b_stack, "l1": l1}


# ----------------------------------------------------------------------------
# Forward
# ----------------------------------------------------------------------------
@jax.jit
def dmcc_forward(x, prepared):
    """x: (B, in_features) float32. prepared: output of prepare_params."""
    B = x.shape[0]
    if B <= MAX_TM:
        TM = max(SUB, ((B + SUB - 1) // SUB) * SUB)
    else:
        TM = MAX_TM
    B_pad = ((B + TM - 1) // TM) * TM

    x2 = x.reshape(B, -1).astype(jnp.bfloat16)
    x_p = jnp.pad(x2, ((0, B_pad - B), (0, LANE - IN_FEATURES)))

    out_p = pl.pallas_call(
        dmcc_kernel,
        out_shape=jax.ShapeDtypeStruct((B_pad, LANE), jnp.float32),
        grid_spec=pltpu.PrefetchScalarGridSpec(
            num_scalar_prefetch=0,
            grid=(B_pad // TM,),
            in_specs=[
                # activations stream per batch tile
                pl.BlockSpec((TM, LANE), lambda i: (i, 0)),
                # weights / biases: constant block -> stay VMEM-resident
                pl.BlockSpec((NUM_LAYERS, LANE, LANE), lambda i: (0, 0, 0)),
                pl.BlockSpec((NUM_LAYERS, 1, LANE), lambda i: (0, 0, 0)),
            ],
            out_specs=pl.BlockSpec((TM, LANE), lambda i: (i, 0)),
        ),
        compiler_params=pltpu.CompilerParams(
            dimension_semantics=("parallel",)),
    )(x_p, prepared["w"], prepared["b"])

    return out_p[:B, :OUT_FEATURES], prepared["l1"]


# ----------------------------------------------------------------------------
# Init + references
# ----------------------------------------------------------------------------
def init_params(key):
    """Kaiming-uniform (relu) weights + PyTorch-default uniform biases.
    Weights stored as (in_features, out_features)."""
    def kaiming_w(k, fan_in, fan_out):
        bound = math.sqrt(6.0 / fan_in)  # gain=sqrt(2) for relu
        return jax.random.uniform(k, (fan_in, fan_out), jnp.float32, -bound, bound)

    def default_b(k, fan_in, fan_out):
        bound = 1.0 / math.sqrt(fan_in)
        return jax.random.uniform(k, (fan_out,), jnp.float32, -bound, bound)

    keys = jax.random.split(key, 2 * NUM_LAYERS)
    ki = iter(keys)
    params = {
        "w1": kaiming_w(next(ki), IN_FEATURES, NEURONS),
        "b1": default_b(next(ki), IN_FEATURES, NEURONS),
        "wh": [], "bh": [],
    }
    for _ in range(HIDDEN_LAYER_NUM):
        params["wh"].append(kaiming_w(next(ki), NEURONS, NEURONS))
        params["bh"].append(default_b(next(ki), NEURONS, NEURONS))
    params["wl"] = kaiming_w(next(ki), NEURONS, OUT_FEATURES)
    params["bl"] = default_b(next(ki), NEURONS, OUT_FEATURES)
    return params


def reference_forward_f32(x, params):
    h = jnp.maximum(x.reshape(x.shape[0], -1) @ params["w1"] + params["b1"], 0.0)
    for w, b in zip(params["wh"], params["bh"]):
        h = jnp.maximum(h @ w + b, 0.0)
    out = h @ params["wl"] + params["bl"]
    l1 = (jnp.sum(jnp.abs(params["w1"]))
          + sum(jnp.sum(jnp.abs(w)) for w in params["wh"])
          + jnp.sum(jnp.abs(params["wl"]))) * L1_WEIGHT
    return out, l1


def reference_forward_bf16(x, params):
    """Same bf16-operand / f32-accumulate quantization as the kernel."""
    h = x.reshape(x.shape[0], -1).astype(jnp.bfloat16)
    h = jnp.dot(h, params["w1"].astype(jnp.bfloat16),
                preferred_element_type=jnp.float32) + params["b1"]
    h = jnp.maximum(h, 0.0)
    for w, b in zip(params["wh"], params["bh"]):
        h = jnp.dot(h.astype(jnp.bfloat16), w.astype(jnp.bfloat16),
                    preferred_element_type=jnp.float32) + b
        h = jnp.maximum(h, 0.0)
    out = jnp.dot(h.astype(jnp.bfloat16), params["wl"].astype(jnp.bfloat16),
                  preferred_element_type=jnp.float32) + params["bl"]
    return out


# ----------------------------------------------------------------------------
if __name__ == "__main__":
    key = jax.random.PRNGKey(0)
    k_param, k_x, k_x2 = jax.random.split(key, 3)
    params = init_params(k_param)
    prepared = prepare_params(params)   # once per parameter update

    # small-batch run
    batch = 4
    x = jax.random.normal(k_x, (batch, IN_FEATURES), jnp.float32)
    out, l1 = dmcc_forward(x, prepared)
    out = jax.block_until_ready(out)
    l1 = jax.block_until_ready(l1)

    ref_bf16 = reference_forward_bf16(x, params)
    ref_f32, ref_l1 = reference_forward_f32(x, params)
    assert out.shape == (batch, OUT_FEATURES)
    assert jnp.allclose(out, ref_bf16, atol=1e-3, rtol=1e-2)
    assert jnp.allclose(out, ref_f32, atol=5e-2, rtol=5e-2)
    assert jnp.allclose(l1, ref_l1, atol=1e-7, rtol=1e-5)

    # larger batch exercises the gridded / multi-tile path
    batch2 = 300
    x2 = jax.random.normal(k_x2, (batch2, IN_FEATURES), jnp.float32)
    out2, _ = dmcc_forward(x2, prepared)
    out2 = jax.block_until_ready(out2)
    ref2 = reference_forward_bf16(x2, params)
    assert out2.shape == (batch2, OUT_FEATURES)
    assert jnp.allclose(out2, ref2, atol=1e-3, rtol=1e-2)

    print("KERNEL_OK")
</pallas_src>

<mosaic_0001>
module attributes {stable_mosaic.version = 11 : i64} {
  func.func @dmcc_kernel(%arg0: i32, %arg1: memref<8x128xbf16, #tpu.memory_space<vmem>>, %arg2: memref<7x128x128xbf16, #tpu.memory_space<vmem>>, %arg3: memref<7x1x128xf32, #tpu.memory_space<vmem>>, %arg4: memref<8x128xf32, #tpu.memory_space<vmem>>) attributes {dimension_semantics = [#tpu.dimension_semantics<parallel>], iteration_bounds = array<i64: 1>, scalar_prefetch = 0 : i64, scratch_operands = 0 : i64, tpu.core_type = #tpu.core_type<tc>, window_params = [{transform_indices = @transform_0, window_bounds = array<i64: 8, 128>}, {pipeline_mode = #tpu.pipeline_mode<synchronous>, transform_indices = @transform_1, window_bounds = array<i64: 7, 128, 128>}, {pipeline_mode = #tpu.pipeline_mode<synchronous>, transform_indices = @transform_2, window_bounds = array<i64: 7, 1, 128>}, {transform_indices = @transform_3, window_bounds = array<i64: 8, 128>}]} {
    %c0 = arith.constant 0 : index
    %c0_0 = arith.constant 0 : index
    %0 = vector.load %arg1[%c0, %c0_0] : memref<8x128xbf16, #tpu.memory_space<vmem>>, vector<8x128xbf16>
    %c0_1 = arith.constant 0 : index
    %c0_2 = arith.constant 0 : index
    %c0_3 = arith.constant 0 : index
    %1 = vector.load %arg2[%c0_1, %c0_2, %c0_3] : memref<7x128x128xbf16, #tpu.memory_space<vmem>>, vector<1x128x128xbf16>
    %2 = vector.shape_cast %1 : vector<1x128x128xbf16> to vector<128x128xbf16>
    %cst = arith.constant dense<0.000000e+00> : vector<8x128xf32>
    %3 = tpu.matmul %0, %2, %cst {dimension_numbers = #tpu.dot_dimension_numbers<[1], [0], [0], [1], [0, 0, 1, 1], [], []>} : vector<8x128xbf16>, vector<128x128xbf16>, vector<8x128xf32> -> vector<8x128xf32>
    %c0_4 = arith.constant 0 : index
    %c0_5 = arith.constant 0 : index
    %c0_6 = arith.constant 0 : index
    %4 = vector.load %arg3[%c0_4, %c0_5, %c0_6] : memref<7x1x128xf32, #tpu.memory_space<vmem>>, vector<1x1x128xf32>
    %5 = vector.shape_cast %4 : vector<1x1x128xf32> to vector<1x128xf32>
    %6 = vector.broadcast %5 : vector<1x128xf32> to vector<8x128xf32>
    %7 = arith.addf %3, %6 : vector<8x128xf32>
    %cst_7 = arith.constant 0.000000e+00 : f32
    %8 = vector.broadcast %cst_7 : f32 to vector<8x128xf32>
    %9 = arith.maximumf %7, %8 : vector<8x128xf32>
    %10 = arith.truncf %9 : vector<8x128xf32> to vector<8x128xbf16>
    %c1 = arith.constant 1 : index
    %c0_8 = arith.constant 0 : index
    %c0_9 = arith.constant 0 : index
    %11 = vector.load %arg2[%c1, %c0_8, %c0_9] : memref<7x128x128xbf16, #tpu.memory_space<vmem>>, vector<1x128x128xbf16>
    %12 = vector.shape_cast %11 : vector<1x128x128xbf16> to vector<128x128xbf16>
    %cst_10 = arith.constant dense<0.000000e+00> : vector<8x128xf32>
    %13 = tpu.matmul %10, %12, %cst_10 {dimension_numbers = #tpu.dot_dimension_numbers<[1], [0], [0], [1], [0, 0, 1, 1], [], []>} : vector<8x128xbf16>, vector<128x128xbf16>, vector<8x128xf32> -> vector<8x128xf32>
    %c1_11 = arith.constant 1 : index
    %c0_12 = arith.constant 0 : index
    %c0_13 = arith.constant 0 : index
    %14 = vector.load %arg3[%c1_11, %c0_12, %c0_13] : memref<7x1x128xf32, #tpu.memory_space<vmem>>, vector<1x1x128xf32>
    %15 = vector.shape_cast %14 : vector<1x1x128xf32> to vector<1x128xf32>
    %16 = vector.broadcast %15 : vector<1x128xf32> to vector<8x128xf32>
    %17 = arith.addf %13, %16 : vector<8x128xf32>
    %cst_14 = arith.constant 0.000000e+00 : f32
    %18 = vector.broadcast %cst_14 : f32 to vector<8x128xf32>
    %19 = arith.maximumf %17, %18 : vector<8x128xf32>
    %20 = arith.truncf %19 : vector<8x128xf32> to vector<8x128xbf16>
    %c2 = arith.constant 2 : index
    %c0_15 = arith.constant 0 : index
    %c0_16 = arith.constant 0 : index
    %21 = vector.load %arg2[%c2, %c0_15, %c0_16] : memref<7x128x128xbf16, #tpu.memory_space<vmem>>, vector<1x128x128xbf16>
    %22 = vector.shape_cast %21 : vector<1x128x128xbf16> to vector<128x128xbf16>
    %cst_17 = arith.constant dense<0.000000e+00> : vector<8x128xf32>
    %23 = tpu.matmul %20, %22, %cst_17 {dimension_numbers = #tpu.dot_dimension_numbers<[1], [0], [0], [1], [0, 0, 1, 1], [], []>} : vector<8x128xbf16>, vector<128x128xbf16>, vector<8x128xf32> -> vector<8x128xf32>
    %c2_18 = arith.constant 2 : index
    %c0_19 = arith.constant 0 : index
    %c0_20 = arith.constant 0 : index
    %24 = vector.load %arg3[%c2_18, %c0_19, %c0_20] : memref<7x1x128xf32, #tpu.memory_space<vmem>>, vector<1x1x128xf32>
    %25 = vector.shape_cast %24 : vector<1x1x128xf32> to vector<1x128xf32>
    %26 = vector.broadcast %25 : vector<1x128xf32> to vector<8x128xf32>
    %27 = arith.addf %23, %26 : vector<8x128xf32>
    %cst_21 = arith.constant 0.000000e+00 : f32
    %28 = vector.broadcast %cst_21 : f32 to vector<8x128xf32>
    %29 = arith.maximumf %27, %28 : vector<8x128xf32>
    %30 = arith.truncf %29 : vector<8x128xf32> to vector<8x128xbf16>
    %c3 = arith.constant 3 : index
    %c0_22 = arith.constant 0 : index
    %c0_23 = arith.constant 0 : index
    %31 = vector.load %arg2[%c3, %c0_22, %c0_23] : memref<7x128x128xbf16, #tpu.memory_space<vmem>>, vector<1x128x128xbf16>
    %32 = vector.shape_cast %31 : vector<1x128x128xbf16> to vector<128x128xbf16>
    %cst_24 = arith.constant dense<0.000000e+00> : vector<8x128xf32>
    %33 = tpu.matmul %30, %32, %cst_24 {dimension_numbers = #tpu.dot_dimension_numbers<[1], [0], [0], [1], [0, 0, 1, 1], [], []>} : vector<8x128xbf16>, vector<128x128xbf16>, vector<8x128xf32> -> vector<8x128xf32>
    %c3_25 = arith.constant 3 : index
    %c0_26 = arith.constant 0 : index
    %c0_27 = arith.constant 0 : index
    %34 = vector.load %arg3[%c3_25, %c0_26, %c0_27] : memref<7x1x128xf32, #tpu.memory_space<vmem>>, vector<1x1x128xf32>
    %35 = vector.shape_cast %34 : vector<1x1x128xf32> to vector<1x128xf32>
    %36 = vector.broadcast %35 : vector<1x128xf32> to vector<8x128xf32>
    %37 = arith.addf %33, %36 : vector<8x128xf32>
    %cst_28 = arith.constant 0.000000e+00 : f32
    %38 = vector.broadcast %cst_28 : f32 to vector<8x128xf32>
    %39 = arith.maximumf %37, %38 : vector<8x128xf32>
    %40 = arith.truncf %39 : vector<8x128xf32> to vector<8x128xbf16>
    %c4 = arith.constant 4 : index
    %c0_29 = arith.constant 0 : index
    %c0_30 = arith.constant 0 : index
    %41 = vector.load %arg2[%c4, %c0_29, %c0_30] : memref<7x128x128xbf16, #tpu.memory_space<vmem>>, vector<1x128x128xbf16>
    %42 = vector.shape_cast %41 : vector<1x128x128xbf16> to vector<128x128xbf16>
    %cst_31 = arith.constant dense<0.000000e+00> : vector<8x128xf32>
    %43 = tpu.matmul %40, %42, %cst_31 {dimension_numbers = #tpu.dot_dimension_numbers<[1], [0], [0], [1], [0, 0, 1, 1], [], []>} : vector<8x128xbf16>, vector<128x128xbf16>, vector<8x128xf32> -> vector<8x128xf32>
    %c4_32 = arith.constant 4 : index
    %c0_33 = arith.constant 0 : index
    %c0_34 = arith.constant 0 : index
    %44 = vector.load %arg3[%c4_32, %c0_33, %c0_34] : memref<7x1x128xf32, #tpu.memory_space<vmem>>, vector<1x1x128xf32>
    %45 = vector.shape_cast %44 : vector<1x1x128xf32> to vector<1x128xf32>
    %46 = vector.broadcast %45 : vector<1x128xf32> to vector<8x128xf32>
    %47 = arith.addf %43, %46 : vector<8x128xf32>
    %cst_35 = arith.constant 0.000000e+00 : f32
    %48 = vector.broadcast %cst_35 : f32 to vector<8x128xf32>
    %49 = arith.maximumf %47, %48 : vector<8x128xf32>
    %50 = arith.truncf %49 : vector<8x128xf32> to vector<8x128xbf16>
    %c5 = arith.constant 5 : index
    %c0_36 = arith.constant 0 : index
    %c0_37 = arith.constant 0 : index
    %51 = vector.load %arg2[%c5, %c0_36, %c0_37] : memref<7x128x128xbf16, #tpu.memory_space<vmem>>, vector<1x128x128xbf16>
    %52 = vector.shape_cast %51 : vector<1x128x128xbf16> to vector<128x128xbf16>
    %cst_38 = arith.constant dense<0.000000e+00> : vector<8x128xf32>
    %53 = tpu.matmul %50, %52, %cst_38 {dimension_numbers = #tpu.dot_dimension_numbers<[1], [0], [0], [1], [0, 0, 1, 1], [], []>} : vector<8x128xbf16>, vector<128x128xbf16>, vector<8x128xf32> -> vector<8x128xf32>
    %c5_39 = arith.constant 5 : index
    %c0_40 = arith.constant 0 : index
    %c0_41 = arith.constant 0 : index
    %54 = vector.load %arg3[%c5_39, %c0_40, %c0_41] : memref<7x1x128xf32, #tpu.memory_space<vmem>>, vector<1x1x128xf32>
    %55 = vector.shape_cast %54 : vector<1x1x128xf32> to vector<1x128xf32>
    %56 = vector.broadcast %55 : vector<1x128xf32> to vector<8x128xf32>
    %57 = arith.addf %53, %56 : vector<8x128xf32>
    %cst_42 = arith.constant 0.000000e+00 : f32
    %58 = vector.broadcast %cst_42 : f32 to vector<8x128xf32>
    %59 = arith.maximumf %57, %58 : vector<8x128xf32>
    %60 = arith.truncf %59 : vector<8x128xf32> to vector<8x128xbf16>
    %c6 = arith.constant 6 : index
    %c0_43 = arith.constant 0 : index
    %c0_44 = arith.constant 0 : index
    %61 = vector.load %arg2[%c6, %c0_43, %c0_44] : memref<7x128x128xbf16, #tpu.memory_space<vmem>>, vector<1x128x128xbf16>
    %62 = vector.shape_cast %61 : vector<1x128x128xbf16> to vector<128x128xbf16>
    %cst_45 = arith.constant dense<0.000000e+00> : vector<8x128xf32>
    %63 = tpu.matmul %60, %62, %cst_45 {dimension_numbers = #tpu.dot_dimension_numbers<[1], [0], [0], [1], [0, 0, 1, 1], [], []>} : vector<8x128xbf16>, vector<128x128xbf16>, vector<8x128xf32> -> vector<8x128xf32>
    %c6_46 = arith.constant 6 : index
    %c0_47 = arith.constant 0 : index
    %c0_48 = arith.constant 0 : index
    %64 = vector.load %arg3[%c6_46, %c0_47, %c0_48] : memref<7x1x128xf32, #tpu.memory_space<vmem>>, vector<1x1x128xf32>
    %65 = vector.shape_cast %64 : vector<1x1x128xf32> to vector<1x128xf32>
    %66 = vector.broadcast %65 : vector<1x128xf32> to vector<8x128xf32>
    %67 = arith.addf %63, %66 : vector<8x128xf32>
    %c0_49 = arith.constant 0 : index
    %c0_50 = arith.constant 0 : index
    %68 = vector.load %arg4[%c0_49, %c0_50] : memref<8x128xf32, #tpu.memory_space<vmem>>, vector<8x128xf32>
    tpu.vector_store %arg4[%c0_49, %c0_50], %67 {strides = array<i32>} : memref<8x128xf32, #tpu.memory_space<vmem>>, vector<8x128xf32>,
    return
  }
  func.func @transform_0(%arg0: i32) -> (i32, i32) {
    %c0_i32 = arith.constant 0 : i32
    %c0_i32_0 = arith.constant 0 : i32
    return %arg0, %c0_i32 : i32, i32
  }
  func.func @transform_1(%arg0: i32) -> (i32, i32, i32) {
    %c0_i32 = arith.constant 0 : i32
    %c0_i32_0 = arith.constant 0 : i32
    %c0_i32_1 = arith.constant 0 : i32
    %c0_i32_2 = arith.constant 0 : i32
    return %c0_i32, %c0_i32_0, %c0_i32_1 : i32, i32, i32
  }
  func.func @transform_2(%arg0: i32) -> (i32, i32, i32) {
    %c0_i32 = arith.constant 0 : i32
    %c0_i32_0 = arith.constant 0 : i32
    %c0_i32_1 = arith.constant 0 : i32
    %c0_i32_2 = arith.constant 0 : i32
    return %c0_i32, %c0_i32_0, %c0_i32_1 : i32, i32, i32
  }
  func.func @transform_3(%arg0: i32) -> (i32, i32) {
    %c0_i32 = arith.constant 0 : i32
    %c0_i32_0 = arith.constant 0 : i32
    return %arg0, %c0_i32 : i32, i32
  }
}

</mosaic_0001>

<llo_original>
// kernel: dmcc_forward.1
$region0: #{dmcc_forward.1}
  #allocation0 [shape = 'u32[]', space=smem, size = 0x4, offset = 0x4, fixed_abs, tag = 'smem constant byte address 0x4 - core index']
  #allocation1 [shape = 'u32[144,128]{1,0:T(1,128)}', space=vmem, size = 0x12000, scoped, tag = 'internal scratch']
  %s0 = inlined_call_operand.vmem [shape: bf16[8,128], index: 0, kind: input, shape index: {}]
  %s1 = inlined_call_operand.hbm [shape: bf16[7,128,128], index: 1, kind: input, shape index: {}]
  %s2 = inlined_call_operand.vmem [shape: f32[7,1,128], index: 2, kind: input, shape index: {}]
  %s3 = inlined_call_operand.vmem [shape: f32[8,128], index: 3, kind: output, shape index: {}]
  %s4 = sld [smem:[#allocation0]]
  $region26: #{dmcc_forward.1} parent=0
    _
  %s6 = ssub.s32 1, %s4
  %s7 = scalar_select 0, %s6, %s4
  $region1: #{dmcc_forward.1} parent=0
    #allocation2 [shape = 'u8[229376]{0}', space=vmem, size = 0x38000, scoped, tag = 'input window, operand 1, single buffered']
    #allocation3 [shape = 's32[1]{0}', space=sflag, size = 0x4, scoped, tag = 'scoped memory for dmcc_forward.1']
    %8 = vsyncpa [#allocation3], 0
    // Predicated region
    $region2: #{dmcc_forward.1} parent=1 // pred_check
      _
    $region3: #{dmcc_forward.1} parent=1 // pred_check_branch
      %10 = sbr.rel (0) target = $region5
    $region4: #{dmcc_forward.1} parent=1 // pred_region
      _
    $region5: #{dmcc_forward.1} parent=1 // pred_fallthru
      _
    // Predicated region
    $region6: #{dmcc_forward.1} parent=1 // pred_check
      _
    $region7: #{dmcc_forward.1} parent=1 // pred_check_branch
      %12 = sbr.rel (0) target = $region9
    $region8: #{dmcc_forward.1} parent=1 // pred_region
      %s14 = ssub.s32 7168, 7168
      %15 = vsyncadd [#allocation3], %s14
      %s16 = sshll.u32 [#allocation2], 4
      %s17 = int_to_ptr.vmem [resolvable:$true] %s16
      %22 = dma.hbm_to_vmem [thread:$0]  %s1, 7168, %s17, [#allocation3], 64, 64, 4
    $region9: #{dmcc_forward.1} parent=1 // pred_fallthru
      _
    // Predicated region
    $region10: #{dmcc_forward.1} parent=1 // pred_check
      _
    $region11: #{dmcc_forward.1} parent=1 // pred_check_branch
      %24 = sbr.rel (0) target = $region13
    $region12: #{dmcc_forward.1} parent=1 // pred_region
      _
    $region13: #{dmcc_forward.1} parent=1 // pred_fallthru
      _
    // Predicated region
    $region14: #{dmcc_forward.1} parent=1 // pred_check
      _
    $region15: #{dmcc_forward.1} parent=1 // pred_check_branch
      %26 = sbr.rel (0) target = $region17
    $region16: #{dmcc_forward.1} parent=1 // pred_region
      %27 = dma.done [#allocation3], 7168
    $region17: #{dmcc_forward.1} parent=1 // pred_fallthru
      _
    %v29 = vld [vmem:[%s0] sm:$0xf]
    %v30 = vld [vmem:[#allocation2] sm:$0xf]
    %v31 = vld [vmem:[#allocation2 + $0x4] sm:$0xf]
    %v32 = vld [vmem:[#allocation2 + $0x8] sm:$0xf]
    %v33 = vld [vmem:[#allocation2 + $0xc] sm:$0xf]
    %v34 = vld [vmem:[#allocation2 + $0x10] sm:$0xf]
    %v35 = vld [vmem:[#allocation2 + $0x14] sm:$0xf]
    %v36 = vld [vmem:[#allocation2 + $0x18] sm:$0xf]
    %v37 = vld [vmem:[#allocation2 + $0x1c] sm:$0xf]
    %v38 = vld [vmem:[#allocation2 + $0x20] sm:$0xf]
    %v39 = vld [vmem:[#allocation2 + $0x24] sm:$0xf]
    %v40 = vld [vmem:[#allocation2 + $0x28] sm:$0xf]
    %v41 = vld [vmem:[#allocation2 + $0x2c] sm:$0xf]
    %v42 = vld [vmem:[#allocation2 + $0x30] sm:$0xf]
    %v43 = vld [vmem:[#allocation2 + $0x34] sm:$0xf]
    %v44 = vld [vmem:[#allocation2 + $0x38] sm:$0xf]
    %v45 = vld [vmem:[#allocation2 + $0x3c] sm:$0xf]
    %v46 = vld [vmem:[%s2] sm:$0x1]
    %v48 = vlaneseq
    %v49 = vshrl.u32 %v48, 7
    %v50 = vsub.s32 0, %v49
    %v51 = vrot.slane %v46, %v50
    %v69 = vunpack.c.l.b16 %v30
    %v70 = vunpack.c.l.b16 %v31
    %v71 = vunpack.c.l.b16 %v32
    %v72 = vunpack.c.l.b16 %v33
    %v73 = vunpack.c.l.b16 %v34
    %v74 = vunpack.c.l.b16 %v35
    %v75 = vunpack.c.l.b16 %v36
    %v76 = vunpack.c.l.b16 %v37
    %v77 = vunpack.c.l.b16 %v38
    %v78 = vunpack.c.l.b16 %v39
    %v79 = vunpack.c.l.b16 %v40
    %v80 = vunpack.c.l.b16 %v41
    %v81 = vunpack.c.l.b16 %v42
    %v82 = vunpack.c.l.b16 %v43
    %v83 = vunpack.c.l.b16 %v44
    %v84 = vunpack.c.l.b16 %v45
    %v85 = vpack.c.b16 %v70, %v69
    %v86 = vpack.c.b16 %v72, %v71
    %v87 = vpack.c.b16 %v74, %v73
    %v88 = vpack.c.b16 %v76, %v75
    %v89 = vpack.c.b16 %v78, %v77
    %v90 = vpack.c.b16 %v80, %v79
    %v91 = vpack.c.b16 %v82, %v81
    %v92 = vpack.c.b16 %v84, %v83
    %101 = vmatprep.subr.bf16.mxu0 0
    %102 = vmatpush1.bf16.msra.mxu0 %v92
    %103 = vmatprep.subr.bf16.mxu0 0
    %104 = vmatpush1.bf16.msra.mxu0 %v91
    %105 = vmatprep.subr.bf16.mxu0 0
    %106 = vmatpush1.bf16.msra.mxu0 %v90
    %107 = vmatprep.subr.bf16.mxu0 0
    %108 = vmatpush1.bf16.msra.mxu0 %v89
    %109 = vmatprep.subr.bf16.mxu0 0
    %110 = vmatpush1.bf16.msra.mxu0 %v88
    %111 = vmatprep.subr.bf16.mxu0 0
    %112 = vmatpush1.bf16.msra.mxu0 %v87
    %113 = vmatprep.subr.bf16.mxu0 0
    %114 = vmatpush1.bf16.msra.mxu0 %v86
    %115 = vmatprep.subr.bf16.mxu0 0
    %116 = vmatpush1.bf16.msra.mxu0 %v85
    %117 = vmatprep.subr.bf16.mxu0 0
    %118 = vmatpush2.bf16.msra.mxu0 0
    %119 = vmatprep.subr.bf16.mxu0 0
    %120 = vmatpush2.bf16.msra.mxu0 0
    %121 = vmatprep.subr.bf16.mxu0 0
    %122 = vmatpush2.bf16.msra.mxu0 0
    %123 = vmatprep.subr.bf16.mxu0 0
    %124 = vmatpush2.bf16.msra.mxu0 0
    %125 = vmatprep.subr.bf16.mxu0 0
    %126 = vmatpush2.bf16.msra.mxu0 0
    %127 = vmatprep.subr.bf16.mxu0 0
    %128 = vmatpush2.bf16.msra.mxu0 0
    %129 = vmatprep.subr.bf16.mxu0 0
    %130 = vmatpush2.bf16.msra.mxu0 0
    %131 = vmatprep.subr.bf16.mxu0 0
    %132 = vmatpush2.bf16.msra.mxu0 0
    %133 = vmatprep.mubr.bf16.mxu0 0
    %134 = vmatmul.mubr.bf16.gmra.mxu0 %v29
    %v135 = vpop.f32.mrf.mxu0
    %v136 = vadd.f32 %v51, %v135
    %v137 = vpop.f32.mrf.mxu0
    %v138 = vpop.f32.mrf.mxu0
    %v139 = vpop.f32.mrf.mxu0
    %140 = vdwg.mxu0
    %v141 = vmax.f32 %v136, 0.0
    %v142 = vpack.c.bf16 %v141, %v141
    %s143 = scalar_lea.vmem [#allocation2], 64
    %v144 = vld [vmem:[%s143] sm:$0xf]
    %v145 = vld [vmem:[%s143 + $0x4] sm:$0xf]
    %v146 = vld [vmem:[%s143 + $0x8] sm:$0xf]
    %v147 = vld [vmem:[%s143 + $0xc] sm:$0xf]
    %v148 = vld [vmem:[%s143 + $0x10] sm:$0xf]
    %v149 = vld [vmem:[%s143 + $0x14] sm:$0xf]
    %v150 = vld [vmem:[%s143 + $0x18] sm:$0xf]
    %v151 = vld [vmem:[%s143 + $0x1c] sm:$0xf]
    %v152 = vld [vmem:[%s143 + $0x20] sm:$0xf]
    %v153 = vld [vmem:[%s143 + $0x24] sm:$0xf]
    %v154 = vld [vmem:[%s143 + $0x28] sm:$0xf]
    %v155 = vld [vmem:[%s143 + $0x2c] sm:$0xf]
    %v156 = vld [vmem:[%s143 + $0x30] sm:$0xf]
    %v157 = vld [vmem:[%s143 + $0x34] sm:$0xf]
    %v158 = vld [vmem:[%s143 + $0x38] sm:$0xf]
    %v159 = vld [vmem:[%s143 + $0x3c] sm:$0xf]
    %s160 = scalar_lea.vmem %s2, 1
    %v161 = vld [vmem:[%s160] sm:$0x1]
    %v163 = vlaneseq
    %v164 = vshrl.u32 %v163, 7
    %v165 = vsub.s32 0, %v164
    %v166 = vrot.slane %v161, %v165
    %v184 = vunpack.c.l.b16 %v144
    %v185 = vunpack.c.l.b16 %v145
    %v186 = vunpack.c.l.b16 %v146
    %v187 = vunpack.c.l.b16 %v147
    %v188 = vunpack.c.l.b16 %v148
    %v189 = vunpack.c.l.b16 %v149
    %v190 = vunpack.c.l.b16 %v150
    %v191 = vunpack.c.l.b16 %v151
    %v192 = vunpack.c.l.b16 %v152
    %v193 = vunpack.c.l.b16 %v153
    %v194 = vunpack.c.l.b16 %v154
    %v195 = vunpack.c.l.b16 %v155
    %v196 = vunpack.c.l.b16 %v156
    %v197 = vunpack.c.l.b16 %v157
    %v198 = vunpack.c.l.b16 %v158
    %v199 = vunpack.c.l.b16 %v159
    %v200 = vpack.c.b16 %v185, %v184
    %v201 = vpack.c.b16 %v187, %v186
    %v202 = vpack.c.b16 %v189, %v188
    %v203 = vpack.c.b16 %v191, %v190
    %v204 = vpack.c.b16 %v193, %v192
    %v205 = vpack.c.b16 %v195, %v194
    %v206 = vpack.c.b16 %v197, %v196
    %v207 = vpack.c.b16 %v199, %v198
    %216 = vmatprep.subr.bf16.mxu0 0
    %217 = vmatpush1.bf16.msra.mxu0 %v207
    %218 = vmatprep.subr.bf16.mxu0 0
    %219 = vmatpush1.bf16.msra.mxu0 %v206
    %220 = vmatprep.subr.bf16.mxu0 0
    %221 = vmatpush1.bf16.msra.mxu0 %v205
    %222 = vmatprep.subr.bf16.mxu0 0
    %223 = vmatpush1.bf16.msra.mxu0 %v204
    %224 = vmatprep.subr.bf16.mxu0 0
    %225 = vmatpush1.bf16.msra.mxu0 %v203
    %226 = vmatprep.subr.bf16.mxu0 0
    %227 = vmatpush1.bf16.msra.mxu0 %v202
    %228 = vmatprep.subr.bf16.mxu0 0
    %229 = vmatpush1.bf16.msra.mxu0 %v201
    %230 = vmatprep.subr.bf16.mxu0 0
    %231 = vmatpush1.bf16.msra.mxu0 %v200
    %232 = vmatprep.subr.bf16.mxu0 0
    %233 = vmatpush2.bf16.msra.mxu0 0
    %234 = vmatprep.subr.bf16.mxu0 0
    %235 = vmatpush2.bf16.msra.mxu0 0
    %236 = vmatprep.subr.bf16.mxu0 0
    %237 = vmatpush2.bf16.msra.mxu0 0
    %238 = vmatprep.subr.bf16.mxu0 0
    %239 = vmatpush2.bf16.msra.mxu0 0
    %240 = vmatprep.subr.bf16.mxu0 0
    %241 = vmatpush2.bf16.msra.mxu0 0
    %242 = vmatprep.subr.bf16.mxu0 0
    %243 = vmatpush2.bf16.msra.mxu0 0
    %244 = vmatprep.subr.bf16.mxu0 0
    %245 = vmatpush2.bf16.msra.mxu0 0
    %246 = vmatprep.subr.bf16.mxu0 0
    %247 = vmatpush2.bf16.msra.mxu0 0
    %248 = vmatprep.mubr.bf16.mxu0 0
    %249 = vmatmul.mubr.bf16.gmra.mxu0 %v142
    %v250 = vpop.f32.mrf.mxu0
    %v251 = vadd.f32 %v166, %v250
    %v252 = vpop.f32.mrf.mxu0
    %v253 = vpop.f32.mrf.mxu0
    %v254 = vpop.f32.mrf.mxu0
    %255 = vdwg.mxu0
    %v256 = vmax.f32 %v251, 0.0
    %v257 = vpack.c.bf16 %v256, %v256
    %s258 = scalar_lea.vmem [#allocation2], 128
    %v259 = vld [vmem:[%s258] sm:$0xf]
    %v260 = vld [vmem:[%s258 + $0x4] sm:$0xf]
    %v261 = vld [vmem:[%s258 + $0x8] sm:$0xf]
    %v262 = vld [vmem:[%s258 + $0xc] sm:$0xf]
    %v263 = vld [vmem:[%s258 + $0x10] sm:$0xf]
    %v264 = vld [vmem:[%s258 + $0x14] sm:$0xf]
    %v265 = vld [vmem:[%s258 + $0x18] sm:$0xf]
    %v266 = vld [vmem:[%s258 + $0x1c] sm:$0xf]
    %v267 = vld [vmem:[%s258 + $0x20] sm:$0xf]
    %v268 = vld [vmem:[%s258 + $0x24] sm:$0xf]
    %v269 = vld [vmem:[%s258 + $0x28] sm:$0xf]
    %v270 = vld [vmem:[%s258 + $0x2c] sm:$0xf]
    %v271 = vld [vmem:[%s258 + $0x30] sm:$0xf]
    %v272 = vld [vmem:[%s258 + $0x34] sm:$0xf]
    %v273 = vld [vmem:[%s258 + $0x38] sm:$0xf]
    %v274 = vld [vmem:[%s258 + $0x3c] sm:$0xf]
    %s275 = scalar_lea.vmem %s2, 2
    %v276 = vld [vmem:[%s275] sm:$0x1]
    %v278 = vlaneseq
    %v279 = vshrl.u32 %v278, 7
    %v280 = vsub.s32 0, %v279
    %v281 = vrot.slane %v276, %v280
    %v299 = vunpack.c.l.b16 %v259
    %v300 = vunpack.c.l.b16 %v260
    %v301 = vunpack.c.l.b16 %v261
    %v302 = vunpack.c.l.b16 %v262
    %v303 = vunpack.c.l.b16 %v263
    %v304 = vunpack.c.l.b16 %v264
    %v305 = vunpack.c.l.b16 %v265
    %v306 = vunpack.c.l.b16 %v266
    %v307 = vunpack.c.l.b16 %v267
    %v308 = vunpack.c.l.b16 %v268
    %v309 = vunpack.c.l.b16 %v269
    %v310 = vunpack.c.l.b16 %v270
    %v311 = vunpack.c.l.b16 %v271
    %v312 = vunpack.c.l.b16 %v272
    %v313 = vunpack.c.l.b16 %v273
    %v314 = vunpack.c.l.b16 %v274
    %v315 = vpack.c.b16 %v300, %v299
    %v316 = vpack.c.b16 %v302, %v301
    %v317 = vpack.c.b16 %v304, %v303
    %v318 = vpack.c.b16 %v306, %v305
    %v319 = vpack.c.b16 %v308, %v307
    %v320 = vpack.c.b16 %v310, %v309
    %v321 = vpack.c.b16 %v312, %v311
    %v322 = vpack.c.b16 %v314, %v313
    %331 = vmatprep.subr.bf16.mxu0 0
    %332 = vmatpush1.bf16.msra.mxu0 %v322
    %333 = vmatprep.subr.bf16.mxu0 0
    %334 = vmatpush1.bf16.msra.mxu0 %v321
    %335 = vmatprep.subr.bf16.mxu0 0
    %336 = vmatpush1.bf16.msra.mxu0 %v320
    %337 = vmatprep.subr.bf16.mxu0 0
    %338 = vmatpush1.bf16.msra.mxu0 %v319
    %339 = vmatprep.subr.bf16.mxu0 0
    %340 = vmatpush1.bf16.msra.mxu0 %v318
    %341 = vmatprep.subr.bf16.mxu0 0
    %342 = vmatpush1.bf16.msra.mxu0 %v317
    %343 = vmatprep.subr.bf16.mxu0 0
    %344 = vmatpush1.bf16.msra.mxu0 %v316
    %345 = vmatprep.subr.bf16.mxu0 0
    %346 = vmatpush1.bf16.msra.mxu0 %v315
    %347 = vmatprep.subr.bf16.mxu0 0
    %348 = vmatpush2.bf16.msra.mxu0 0
    %349 = vmatprep.subr.bf16.mxu0 0
    %350 = vmatpush2.bf16.msra.mxu0 0
    %351 = vmatprep.subr.bf16.mxu0 0
    %352 = vmatpush2.bf16.msra.mxu0 0
    %353 = vmatprep.subr.bf16.mxu0 0
    %354 = vmatpush2.bf16.msra.mxu0 0
    %355 = vmatprep.subr.bf16.mxu0 0
    %356 = vmatpush2.bf16.msra.mxu0 0
    %357 = vmatprep.subr.bf16.mxu0 0
    %358 = vmatpush2.bf16.msra.mxu0 0
    %359 = vmatprep.subr.bf16.mxu0 0
    %360 = vmatpush2.bf16.msra.mxu0 0
    %361 = vmatprep.subr.bf16.mxu0 0
    %362 = vmatpush2.bf16.msra.mxu0 0
    %363 = vmatprep.mubr.bf16.mxu0 0
    %364 = vmatmul.mubr.bf16.gmra.mxu0 %v257
    %v365 = vpop.f32.mrf.mxu0
    %v366 = vadd.f32 %v281, %v365
    %v367 = vpop.f32.mrf.mxu0
    %v368 = vpop.f32.mrf.mxu0
    %v369 = vpop.f32.mrf.mxu0
    %370 = vdwg.mxu0
    %v371 = vmax.f32 %v366, 0.0
    %v372 = vpack.c.bf16 %v371, %v371
    %s373 = scalar_lea.vmem [#allocation2], 192
    %v374 = vld [vmem:[%s373] sm:$0xf]
    %v375 = vld [vmem:[%s373 + $0x4] sm:$0xf]
    %v376 = vld [vmem:[%s373 + $0x8] sm:$0xf]
    %v377 = vld [vmem:[%s373 + $0xc] sm:$0xf]
    %v378 = vld [vmem:[%s373 + $0x10] sm:$0xf]
    %v379 = vld [vmem:[%s373 + $0x14] sm:$0xf]
    %v380 = vld [vmem:[%s373 + $0x18] sm:$0xf]
    %v381 = vld [vmem:[%s373 + $0x1c] sm:$0xf]
    %v382 = vld [vmem:[%s373 + $0x20] sm:$0xf]
    %v383 = vld [vmem:[%s373 + $0x24] sm:$0xf]
    %v384 = vld [vmem:[%s373 + $0x28] sm:$0xf]
    %v385 = vld [vmem:[%s373 + $0x2c] sm:$0xf]
    %v386 = vld [vmem:[%s373 + $0x30] sm:$0xf]
    %v387 = vld [vmem:[%s373 + $0x34] sm:$0xf]
    %v388 = vld [vmem:[%s373 + $0x38] sm:$0xf]
    %v389 = vld [vmem:[%s373 + $0x3c] sm:$0xf]
    %s390 = scalar_lea.vmem %s2, 3
    %v391 = vld [vmem:[%s390] sm:$0x1]
    %v393 = vlaneseq
    %v394 = vshrl.u32 %v393, 7
    %v395 = vsub.s32 0, %v394
    %v396 = vrot.slane %v391, %v395
    %v414 = vunpack.c.l.b16 %v374
    %v415 = vunpack.c.l.b16 %v375
    %v416 = vunpack.c.l.b16 %v376
    %v417 = vunpack.c.l.b16 %v377
    %v418 = vunpack.c.l.b16 %v378
    %v419 = vunpack.c.l.b16 %v379
    %v420 = vunpack.c.l.b16 %v380
    %v421 = vunpack.c.l.b16 %v381
    %v422 = vunpack.c.l.b16 %v382
    %v423 = vunpack.c.l.b16 %v383
    %v424 = vunpack.c.l.b16 %v384
    %v425 = vunpack.c.l.b16 %v385
    %v426 = vunpack.c.l.b16 %v386
    %v427 = vunpack.c.l.b16 %v387
    %v428 = vunpack.c.l.b16 %v388
    %v429 = vunpack.c.l.b16 %v389
    %v430 = vpack.c.b16 %v415, %v414
    %v431 = vpack.c.b16 %v417, %v416
    %v432 = vpack.c.b16 %v419, %v418
    %v433 = vpack.c.b16 %v421, %v420
    %v434 = vpack.c.b16 %v423, %v422
    %v435 = vpack.c.b16 %v425, %v424
    %v436 = vpack.c.b16 %v427, %v426
    %v437 = vpack.c.b16 %v429, %v428
    %446 = vmatprep.subr.bf16.mxu0 0
    %447 = vmatpush1.bf16.msra.mxu0 %v437
    %448 = vmatprep.subr.bf16.mxu0 0
    %449 = vmatpush1.bf16.msra.mxu0 %v436
    %450 = vmatprep.subr.bf16.mxu0 0
    %451 = vmatpush1.bf16.msra.mxu0 %v435
    %452 = vmatprep.subr.bf16.mxu0 0
    %453 = vmatpush1.bf16.msra.mxu0 %v434
    %454 = vmatprep.subr.bf16.mxu0 0
    %455 = vmatpush1.bf16.msra.mxu0 %v433
    %456 = vmatprep.subr.bf16.mxu0 0
    %457 = vmatpush1.bf16.msra.mxu0 %v432
    %458 = vmatprep.subr.bf16.mxu0 0
    %459 = vmatpush1.bf16.msra.mxu0 %v431
    %460 = vmatprep.subr.bf16.mxu0 0
    %461 = vmatpush1.bf16.msra.mxu0 %v430
    %462 = vmatprep.subr.bf16.mxu0 0
    %463 = vmatpush2.bf16.msra.mxu0 0
    %464 = vmatprep.subr.bf16.mxu0 0
    %465 = vmatpush2.bf16.msra.mxu0 0
    %466 = vmatprep.subr.bf16.mxu0 0
    %467 = vmatpush2.bf16.msra.mxu0 0
    %468 = vmatprep.subr.bf16.mxu0 0
    %469 = vmatpush2.bf16.msra.mxu0 0
    %470 = vmatprep.subr.bf16.mxu0 0
    %471 = vmatpush2.bf16.msra.mxu0 0
    %472 = vmatprep.subr.bf16.mxu0 0
    %473 = vmatpush2.bf16.msra.mxu0 0
    %474 = vmatprep.subr.bf16.mxu0 0
    %475 = vmatpush2.bf16.msra.mxu0 0
    %476 = vmatprep.subr.bf16.mxu0 0
    %477 = vmatpush2.bf16.msra.mxu0 0
    %478 = vmatprep.mubr.bf16.mxu0 0
    %479 = vmatmul.mubr.bf16.gmra.mxu0 %v372
    %v480 = vpop.f32.mrf.mxu0
    %v481 = vadd.f32 %v396, %v480
    %v482 = vpop.f32.mrf.mxu0
    %v483 = vpop.f32.mrf.mxu0
    %v484 = vpop.f32.mrf.mxu0
    %485 = vdwg.mxu0
    %v486 = vmax.f32 %v481, 0.0
    %v487 = vpack.c.bf16 %v486, %v486
    %s488 = scalar_lea.vmem [#allocation2], 256
    %v489 = vld [vmem:[%s488] sm:$0xf]
    %v490 = vld [vmem:[%s488 + $0x4] sm:$0xf]
    %v491 = vld [vmem:[%s488 + $0x8] sm:$0xf]
    %v492 = vld [vmem:[%s488 + $0xc] sm:$0xf]
    %v493 = vld [vmem:[%s488 + $0x10] sm:$0xf]
    %v494 = vld [vmem:[%s488 + $0x14] sm:$0xf]
    %v495 = vld [vmem:[%s488 + $0x18] sm:$0xf]
    %v496 = vld [vmem:[%s488 + $0x1c] sm:$0xf]
    %v497 = vld [vmem:[%s488 + $0x20] sm:$0xf]
    %v498 = vld [vmem:[%s488 + $0x24] sm:$0xf]
    %v499 = vld [vmem:[%s488 + $0x28] sm:$0xf]
    %v500 = vld [vmem:[%s488 + $0x2c] sm:$0xf]
    %v501 = vld [vmem:[%s488 + $0x30] sm:$0xf]
    %v502 = vld [vmem:[%s488 + $0x34] sm:$0xf]
    %v503 = vld [vmem:[%s488 + $0x38] sm:$0xf]
    %v504 = vld [vmem:[%s488 + $0x3c] sm:$0xf]
    %s505 = scalar_lea.vmem %s2, 4
    %v506 = vld [vmem:[%s505] sm:$0x1]
    %v508 = vlaneseq
    %v509 = vshrl.u32 %v508, 7
    %v510 = vsub.s32 0, %v509
    %v511 = vrot.slane %v506, %v510
    %v529 = vunpack.c.l.b16 %v489
    %v530 = vunpack.c.l.b16 %v490
    %v531 = vunpack.c.l.b16 %v491
    %v532 = vunpack.c.l.b16 %v492
    %v533 = vunpack.c.l.b16 %v493
    %v534 = vunpack.c.l.b16 %v494
    %v535 = vunpack.c.l.b16 %v495
    %v536 = vunpack.c.l.b16 %v496
    %v537 = vunpack.c.l.b16 %v497
    %v538 = vunpack.c.l.b16 %v498
    %v539 = vunpack.c.l.b16 %v499
    %v540 = vunpack.c.l.b16 %v500
    %v541 = vunpack.c.l.b16 %v501
    %v542 = vunpack.c.l.b16 %v502
    %v543 = vunpack.c.l.b16 %v503
    %v544 = vunpack.c.l.b16 %v504
    %v545 = vpack.c.b16 %v530, %v529
    %v546 = vpack.c.b16 %v532, %v531
    %v547 = vpack.c.b16 %v534, %v533
    %v548 = vpack.c.b16 %v536, %v535
    %v549 = vpack.c.b16 %v538, %v537
    %v550 = vpack.c.b16 %v540, %v539
    %v551 = vpack.c.b16 %v542, %v541
    %v552 = vpack.c.b16 %v544, %v543
    %561 = vmatprep.subr.bf16.mxu0 0
    %562 = vmatpush1.bf16.msra.mxu0 %v552
    %563 = vmatprep.subr.bf16.mxu0 0
    %564 = vmatpush1.bf16.msra.mxu0 %v551
    %565 = vmatprep.subr.bf16.mxu0 0
    %566 = vmatpush1.bf16.msra.mxu0 %v550
    %567 = vmatprep.subr.bf16.mxu0 0
    %568 = vmatpush1.bf16.msra.mxu0 %v549
    %569 = vmatprep.subr.bf16.mxu0 0
    %570 = vmatpush1.bf16.msra.mxu0 %v548
    %571 = vmatprep.subr.bf16.mxu0 0
    %572 = vmatpush1.bf16.msra.mxu0 %v547
    %573 = vmatprep.subr.bf16.mxu0 0
    %574 = vmatpush1.bf16.msra.mxu0 %v546
    %575 = vmatprep.subr.bf16.mxu0 0
    %576 = vmatpush1.bf16.msra.mxu0 %v545
    %577 = vmatprep.subr.bf16.mxu0 0
    %578 = vmatpush2.bf16.msra.mxu0 0
    %579 = vmatprep.subr.bf16.mxu0 0
    %580 = vmatpush2.bf16.msra.mxu0 0
    %581 = vmatprep.subr.bf16.mxu0 0
    %582 = vmatpush2.bf16.msra.mxu0 0
    %583 = vmatprep.subr.bf16.mxu0 0
    %584 = vmatpush2.bf16.msra.mxu0 0
    %585 = vmatprep.subr.bf16.mxu0 0
    %586 = vmatpush2.bf16.msra.mxu0 0
    %587 = vmatprep.subr.bf16.mxu0 0
    %588 = vmatpush2.bf16.msra.mxu0 0
    %589 = vmatprep.subr.bf16.mxu0 0
    %590 = vmatpush2.bf16.msra.mxu0 0
    %591 = vmatprep.subr.bf16.mxu0 0
    %592 = vmatpush2.bf16.msra.mxu0 0
    %593 = vmatprep.mubr.bf16.mxu0 0
    %594 = vmatmul.mubr.bf16.gmra.mxu0 %v487
    %v595 = vpop.f32.mrf.mxu0
    %v596 = vadd.f32 %v511, %v595
    %v597 = vpop.f32.mrf.mxu0
    %v598 = vpop.f32.mrf.mxu0
    %v599 = vpop.f32.mrf.mxu0
    %600 = vdwg.mxu0
    %v601 = vmax.f32 %v596, 0.0
    %v602 = vpack.c.bf16 %v601, %v601
    %s603 = scalar_lea.vmem [#allocation2], 320
    %v604 = vld [vmem:[%s603] sm:$0xf]
    %v605 = vld [vmem:[%s603 + $0x4] sm:$0xf]
    %v606 = vld [vmem:[%s603 + $0x8] sm:$0xf]
    %v607 = vld [vmem:[%s603 + $0xc] sm:$0xf]
    %v608 = vld [vmem:[%s603 + $0x10] sm:$0xf]
    %v609 = vld [vmem:[%s603 + $0x14] sm:$0xf]
    %v610 = vld [vmem:[%s603 + $0x18] sm:$0xf]
    %v611 = vld [vmem:[%s603 + $0x1c] sm:$0xf]
    %v612 = vld [vmem:[%s603 + $0x20] sm:$0xf]
    %v613 = vld [vmem:[%s603 + $0x24] sm:$0xf]
    %v614 = vld [vmem:[%s603 + $0x28] sm:$0xf]
    %v615 = vld [vmem:[%s603 + $0x2c] sm:$0xf]
    %v616 = vld [vmem:[%s603 + $0x30] sm:$0xf]
    %v617 = vld [vmem:[%s603 + $0x34] sm:$0xf]
    %v618 = vld [vmem:[%s603 + $0x38] sm:$0xf]
    %v619 = vld [vmem:[%s603 + $0x3c] sm:$0xf]
    %s620 = scalar_lea.vmem %s2, 5
    %v621 = vld [vmem:[%s620] sm:$0x1]
    %v623 = vlaneseq
    %v624 = vshrl.u32 %v623, 7
    %v625 = vsub.s32 0, %v624
    %v626 = vrot.slane %v621, %v625
    %v644 = vunpack.c.l.b16 %v604
    %v645 = vunpack.c.l.b16 %v605
    %v646 = vunpack.c.l.b16 %v606
    %v647 = vunpack.c.l.b16 %v607
    %v648 = vunpack.c.l.b16 %v608
    %v649 = vunpack.c.l.b16 %v609
    %v650 = vunpack.c.l.b16 %v610
    %v651 = vunpack.c.l.b16 %v611
    %v652 = vunpack.c.l.b16 %v612
    %v653 = vunpack.c.l.b16 %v613
    %v654 = vunpack.c.l.b16 %v614
    %v655 = vunpack.c.l.b16 %v615
    %v656 = vunpack.c.l.b16 %v616
    %v657 = vunpack.c.l.b16 %v617
    %v658 = vunpack.c.l.b16 %v618
    %v659 = vunpack.c.l.b16 %v619
    %v660 = vpack.c.b16 %v645, %v644
    %v661 = vpack.c.b16 %v647, %v646
    %v662 = vpack.c.b16 %v649, %v648
    %v663 = vpack.c.b16 %v651, %v650
    %v664 = vpack.c.b16 %v653, %v652
    %v665 = vpack.c.b16 %v655, %v654
    %v666 = vpack.c.b16 %v657, %v656
    %v667 = vpack.c.b16 %v659, %v658
    %676 = vmatprep.subr.bf16.mxu0 0
    %677 = vmatpush1.bf16.msra.mxu0 %v667
    %678 = vmatprep.subr.bf16.mxu0 0
    %679 = vmatpush1.bf16.msra.mxu0 %v666
    %680 = vmatprep.subr.bf16.mxu0 0
    %681 = vmatpush1.bf16.msra.mxu0 %v665
    %682 = vmatprep.subr.bf16.mxu0 0
    %683 = vmatpush1.bf16.msra.mxu0 %v664
    %684 = vmatprep.subr.bf16.mxu0 0
    %685 = vmatpush1.bf16.msra.mxu0 %v663
    %686 = vmatprep.subr.bf16.mxu0 0
    %687 = vmatpush1.bf16.msra.mxu0 %v662
    %688 = vmatprep.subr.bf16.mxu0 0
    %689 = vmatpush1.bf16.msra.mxu0 %v661
    %690 = vmatprep.subr.bf16.mxu0 0
    %691 = vmatpush1.bf16.msra.mxu0 %v660
    %692 = vmatprep.subr.bf16.mxu0 0
    %693 = vmatpush2.bf16.msra.mxu0 0
    %694 = vmatprep.subr.bf16.mxu0 0
    %695 = vmatpush2.bf16.msra.mxu0 0
    %696 = vmatprep.subr.bf16.mxu0 0
    %697 = vmatpush2.bf16.msra.mxu0 0
    %698 = vmatprep.subr.bf16.mxu0 0
    %699 = vmatpush2.bf16.msra.mxu0 0
    %700 = vmatprep.subr.bf16.mxu0 0
    %701 = vmatpush2.bf16.msra.mxu0 0
    %702 = vmatprep.subr.bf16.mxu0 0
    %703 = vmatpush2.bf16.msra.mxu0 0
    %704 = vmatprep.subr.bf16.mxu0 0
    %705 = vmatpush2.bf16.msra.mxu0 0
    %706 = vmatprep.subr.bf16.mxu0 0
    %707 = vmatpush2.bf16.msra.mxu0 0
    %708 = vmatprep.mubr.bf16.mxu0 0
    %709 = vmatmul.mubr.bf16.gmra.mxu0 %v602
    %v710 = vpop.f32.mrf.mxu0
    %v711 = vadd.f32 %v626, %v710
    %v712 = vpop.f32.mrf.mxu0
    %v713 = vpop.f32.mrf.mxu0
    %v714 = vpop.f32.mrf.mxu0
    %715 = vdwg.mxu0
    %v716 = vmax.f32 %v711, 0.0
    %v717 = vpack.c.bf16 %v716, %v716
    %s718 = scalar_lea.vmem [#allocation2], 384
    %v719 = vld [vmem:[%s718] sm:$0xf]
    %v720 = vld [vmem:[%s718 + $0x4] sm:$0xf]
    %v721 = vld [vmem:[%s718 + $0x8] sm:$0xf]
    %v722 = vld [vmem:[%s718 + $0xc] sm:$0xf]
    %v723 = vld [vmem:[%s718 + $0x10] sm:$0xf]
    %v724 = vld [vmem:[%s718 + $0x14] sm:$0xf]
    %v725 = vld [vmem:[%s718 + $0x18] sm:$0xf]
    %v726 = vld [vmem:[%s718 + $0x1c] sm:$0xf]
    %v727 = vld [vmem:[%s718 + $0x20] sm:$0xf]
    %v728 = vld [vmem:[%s718 + $0x24] sm:$0xf]
    %v729 = vld [vmem:[%s718 + $0x28] sm:$0xf]
    %v730 = vld [vmem:[%s718 + $0x2c] sm:$0xf]
    %v731 = vld [vmem:[%s718 + $0x30] sm:$0xf]
    %v732 = vld [vmem:[%s718 + $0x34] sm:$0xf]
    %v733 = vld [vmem:[%s718 + $0x38] sm:$0xf]
    %v734 = vld [vmem:[%s718 + $0x3c] sm:$0xf]
    %s735 = scalar_lea.vmem %s2, 6
    %v736 = vld [vmem:[%s735] sm:$0x1]
    %v738 = vlaneseq
    %v739 = vshrl.u32 %v738, 7
    %v740 = vsub.s32 0, %v739
    %v741 = vrot.slane %v736, %v740
    %v759 = vunpack.c.l.b16 %v719
    %v760 = vunpack.c.l.b16 %v720
    %v761 = vunpack.c.l.b16 %v721
    %v762 = vunpack.c.l.b16 %v722
    %v763 = vunpack.c.l.b16 %v723
    %v764 = vunpack.c.l.b16 %v724
    %v765 = vunpack.c.l.b16 %v725
    %v766 = vunpack.c.l.b16 %v726
    %v767 = vunpack.c.l.b16 %v727
    %v768 = vunpack.c.l.b16 %v728
    %v769 = vunpack.c.l.b16 %v729
    %v770 = vunpack.c.l.b16 %v730
    %v771 = vunpack.c.l.b16 %v731
    %v772 = vunpack.c.l.b16 %v732
    %v773 = vunpack.c.l.b16 %v733
    %v774 = vunpack.c.l.b16 %v734
    %v775 = vpack.c.b16 %v760, %v759
    %v776 = vpack.c.b16 %v762, %v761
    %v777 = vpack.c.b16 %v764, %v763
    %v778 = vpack.c.b16 %v766, %v765
    %v779 = vpack.c.b16 %v768, %v767
    %v780 = vpack.c.b16 %v770, %v769
    %v781 = vpack.c.b16 %v772, %v771
    %v782 = vpack.c.b16 %v774, %v773
    %791 = vmatprep.subr.bf16.mxu0 0
    %792 = vmatpush1.bf16.msra.mxu0 %v782
    %793 = vmatprep.subr.bf16.mxu0 0
    %794 = vmatpush1.bf16.msra.mxu0 %v781
    %795 = vmatprep.subr.bf16.mxu0 0
    %796 = vmatpush1.bf16.msra.mxu0 %v780
    %797 = vmatprep.subr.bf16.mxu0 0
    %798 = vmatpush1.bf16.msra.mxu0 %v779
    %799 = vmatprep.subr.bf16.mxu0 0
    %800 = vmatpush1.bf16.msra.mxu0 %v778
    %801 = vmatprep.subr.bf16.mxu0 0
    %802 = vmatpush1.bf16.msra.mxu0 %v777
    %803 = vmatprep.subr.bf16.mxu0 0
    %804 = vmatpush1.bf16.msra.mxu0 %v776
    %805 = vmatprep.subr.bf16.mxu0 0
    %806 = vmatpush1.bf16.msra.mxu0 %v775
    %807 = vmatprep.subr.bf16.mxu0 0
    %808 = vmatpush2.bf16.msra.mxu0 0
    %809 = vmatprep.subr.bf16.mxu0 0
    %810 = vmatpush2.bf16.msra.mxu0 0
    %811 = vmatprep.subr.bf16.mxu0 0
    %812 = vmatpush2.bf16.msra.mxu0 0
    %813 = vmatprep.subr.bf16.mxu0 0
    %814 = vmatpush2.bf16.msra.mxu0 0
    %815 = vmatprep.subr.bf16.mxu0 0
    %816 = vmatpush2.bf16.msra.mxu0 0
    %817 = vmatprep.subr.bf16.mxu0 0
    %818 = vmatpush2.bf16.msra.mxu0 0
    %819 = vmatprep.subr.bf16.mxu0 0
    %820 = vmatpush2.bf16.msra.mxu0 0
    %821 = vmatprep.subr.bf16.mxu0 0
    %822 = vmatpush2.bf16.msra.mxu0 0
    %823 = vmatprep.mubr.bf16.mxu0 0
    %824 = vmatmul.mubr.bf16.gmra.mxu0 %v717
    %v825 = vpop.f32.mrf.mxu0
    %v826 = vadd.f32 %v741, %v825
    %v827 = vpop.f32.mrf.mxu0
    %v828 = vpop.f32.mrf.mxu0
    %v829 = vpop.f32.mrf.mxu0
    %830 = vdwg.mxu0
    %831 = vst [vmem:[%s3] sm:$0xff] %v826
    // Predicated region
    $region18: #{dmcc_forward.1} parent=1 // pred_check
      _
    $region19: #{dmcc_forward.1} parent=1 // pred_check_branch
      %833 = sbr.rel (0) target = $region21
    $region20: #{dmcc_forward.1} parent=1 // pred_region
      _
    $region21: #{dmcc_forward.1} parent=1 // pred_fallthru
      _
    // Predicated region
    $region22: #{dmcc_forward.1} parent=1 // pred_check
      _
    $region23: #{dmcc_forward.1} parent=1 // pred_check_branch
      %835 = sbr.rel (0) target = $region25
    $region24: #{dmcc_forward.1} parent=1 // pred_region
      _
    $region25: #{dmcc_forward.1} parent=1 // pred_fallthru
      _
    %836 = vsyncpa [#allocation3], 1

</llo_original>
